<compile_context>
chip_gen: v7x
topology: tpu7x:2x2x1
jax: 0.10.0
libtpu: 0.0.40
codegen_flags: <defaults>
</compile_context>

<pallas_src>
import functools

import jax
import jax.numpy as jnp
from jax.experimental import pallas as pl
from jax.experimental.pallas import tpu as pltpu


def _contrastive_kernel(x1_ref, x2_ref, lbl_ref, out_ref, acc_ref, *,
                        margin, eps, n_valid, tile_rows, tiles_per_core,
                        needs_mask):
    c = pl.program_id(0)   # core-split lane (parallel)
    i = pl.program_id(1)   # batch tile within this lane (arbitrary / reduction)

    @pl.when(i == 0)
    def _init():
        acc_ref[...] = jnp.zeros_like(acc_ref)

    # Stream native dtype, compute in f32.
    x1 = x1_ref[...].astype(jnp.float32)        # (TB, D)
    x2 = x2_ref[...].astype(jnp.float32)        # (TB, D)
    lbl = lbl_ref[...].astype(jnp.float32)      # (TB, 1)

    diff = x1 - x2 + eps                                      # per-element eps, as in torch
    sq_dist = jnp.sum(diff * diff, axis=-1, keepdims=True)    # (TB, 1) == d^2
    dist = jnp.sqrt(sq_dist)                                  # (TB, 1)

    per_example = lbl * sq_dist + (1.0 - lbl) * jnp.square(
        jnp.maximum(margin - dist, 0.0))                      # (TB, 1)

    if needs_mask:
        # Unclamped global row offset of this tile (index_map clamps the DMA
        # block index; the mask uses the *logical* offset so duplicated /
        # garbage rows contribute exactly zero).
        row0 = (c * tiles_per_core + i) * tile_rows

        @pl.when(row0 + tile_rows <= n_valid)
        def _full_tile():                       # fast path: no iota/compare/select
            acc_ref[...] += per_example

        @pl.when(row0 + tile_rows > n_valid)
        def _ragged_tile():                     # ragged or fully-OOB tile
            row = jax.lax.broadcasted_iota(jnp.int32, per_example.shape, 0) + row0
            acc_ref[...] += jnp.where(row < n_valid, per_example, 0.0)
    else:
        acc_ref[...] += per_example

    @pl.when(i == pl.num_programs(1) - 1)
    def _finalize():
        partial = jnp.sum(acc_ref[...])         # single cross-lane reduce per core
        out_ref[...] = jnp.full(out_ref.shape, partial, jnp.float32)


def _sublane(itemsize):
    return {4: 8, 2: 16, 1: 32}.get(int(itemsize), 8)


def _vmem_capacity_bytes():
    """Physical VMEM of the current generation; conservative 64 MiB fallback."""
    try:
        cap = getattr(pltpu.get_tpu_info(), "vmem_capacity_bytes", None)
        if cap:
            return int(cap)
    except Exception:
        pass
    return 64 * 1024 * 1024


def _bytes_per_row(D, itemsize):
    # 2 embeddings x 2 pipeline buffers (native dtype)
    # + ~3 f32 (tb, D) in-kernel temporaries (upcasts / diff / diff^2)
    # + lane-padded (tb,1) label double-buffer + (tb,1) f32 accumulator + slack
    return 4 * D * itemsize + 12 * D + 2 * 512 + 512 + 256


def _choose_tile_rows(B, D, itemsize, vmem_cap):
    """Rows per batch tile: multi-MiB blocks (amortize ~0.35us/step overhead),
    sized against a generation-aware VMEM budget including f32 temporaries."""
    sub = _sublane(itemsize)
    budget = (48 << 20) if vmem_cap >= (100 << 20) else (24 << 20)
    tb = max(sub, budget // _bytes_per_row(D, itemsize))
    tb = min(tb, 32768)
    tb = max(sub, (tb // sub) * sub)
    b_ceil = ((B + sub - 1) // sub) * sub
    return int(min(tb, b_ceil))


def contrastive_loss(output1, output2, label, margin=1.0, eps=1e-6,
                     tile_rows=None, num_core_split=2):
    """Pallas TPU implementation of ContrastiveLoss.forward."""
    assert output1.shape == output2.shape and output1.ndim == 2
    B, D = output1.shape

    # Labels are tiny (B,1); cast once. Embeddings stay in their native dtype.
    label = label.astype(jnp.float32).reshape(B, 1)

    itemsize = jnp.dtype(output1.dtype).itemsize
    sub = _sublane(itemsize)
    vmem_cap = _vmem_capacity_bytes()

    if tile_rows is not None:
        tb = max(sub, (int(tile_rows) // sub) * sub)
    else:
        tb = _choose_tile_rows(B, D, itemsize, vmem_cap)

    n_tiles = pl.cdiv(B, tb)
    num_cores = max(1, int(num_core_split))      # v7x: 2 TCs; serial loop elsewhere
    tpc = pl.cdiv(n_tiles, num_cores)            # tiles per core-split lane
    needs_mask = (num_cores * tpc * tb != B)     # ragged and/or fully-OOB tail tiles

    kernel = functools.partial(
        _contrastive_kernel,
        margin=float(margin), eps=float(eps),
        n_valid=B, tile_rows=tb, tiles_per_core=tpc, needs_mask=needs_mask,
    )

    def blk(c, i):
        # Clamp so DMA windows of fully-OOB tail tiles stay in bounds; the
        # kernel's logical-row mask zeroes their contribution.
        return (jnp.minimum(c * tpc + i, n_tiles - 1), 0)

    live_bytes = tb * _bytes_per_row(D, itemsize)
    upper = (96 << 20) if vmem_cap >= (100 << 20) else (48 << 20)
    vmem_limit = int(min(max(live_bytes + (8 << 20), 32 << 20), upper, vmem_cap))

    out = pl.pallas_call(
        kernel,
        out_shape=jax.ShapeDtypeStruct((num_cores, 8, 128), jnp.float32),
        grid=(num_cores, tpc),
        in_specs=[
            pl.BlockSpec((tb, D), blk),
            pl.BlockSpec((tb, D), blk),
            pl.BlockSpec((tb, 1), blk),
        ],
        # Per-core (8,128) partial block -> no write race across the parallel axis.
        out_specs=pl.BlockSpec((1, 8, 128), lambda c, i: (c, 0, 0)),
        scratch_shapes=[pltpu.VMEM((tb, 1), jnp.float32)],
        compiler_params=pltpu.CompilerParams(
            dimension_semantics=("parallel", "arbitrary"),
            vmem_limit_bytes=vmem_limit,
        ),
        cost_estimate=pl.CostEstimate(
            flops=int(4 * B * D + 8 * B),
            transcendentals=int(B),
            bytes_accessed=int(2 * B * D * itemsize + B * 4
                               + num_cores * 8 * 128 * 4),
        ),
    )(output1, output2, label)

    partials = out[:, 0, 0]                      # one partial sum per core-split lane
    return jnp.sum(partials) / jnp.float32(B)


def _reference(output1, output2, label, margin=1.0, eps=1e-6):
    o1 = output1.astype(jnp.float32)
    o2 = output2.astype(jnp.float32)
    lbl = label.astype(jnp.float32)
    d = jnp.sqrt(jnp.sum((o1 - o2 + eps) ** 2, axis=-1, keepdims=True))
    return jnp.mean(lbl * d**2 + (1.0 - lbl) * jnp.maximum(margin - d, 0.0) ** 2)


if __name__ == "__main__":
    key = jax.random.PRNGKey(0)
    k1, k2, k3 = jax.random.split(key, 3)

    B, D = 20, 32
    output1 = jax.random.normal(k1, (B, D), dtype=jnp.float32)
    output2 = jax.random.normal(k2, (B, D), dtype=jnp.float32)
    label = jax.random.bernoulli(k3, 0.5, (B, 1)).astype(jnp.float32)

    ref = _reference(output1, output2, label, margin=1.0)

    # Forced small tile: multi-tile accumulation + ragged last tile + a fully
    # out-of-bounds tile on the second core-split lane (mask + clamp path).
    loss = jax.block_until_ready(
        contrastive_loss(output1, output2, label, margin=1.0, tile_rows=8))
    assert jnp.allclose(loss, ref, atol=1e-5, rtol=1e-5), (loss, ref)

    # Auto tile size (single tile per core-split lane, ragged).
    loss_auto = jax.block_until_ready(
        contrastive_loss(output1, output2, label, margin=1.0))
    assert jnp.allclose(loss_auto, ref, atol=1e-5, rtol=1e-5), (loss_auto, ref)

    # Native bf16 streaming path (upcast happens inside the kernel).
    o1_bf = output1.astype(jnp.bfloat16)
    o2_bf = output2.astype(jnp.bfloat16)
    loss_bf = jax.block_until_ready(
        contrastive_loss(o1_bf, o2_bf, label, margin=1.0, tile_rows=16))
    ref_bf = _reference(o1_bf, o2_bf, label, margin=1.0)
    assert jnp.allclose(loss_bf, ref_bf, atol=1e-4, rtol=1e-4), (loss_bf, ref_bf)

    print("KERNEL_OK")
</pallas_src>

<mosaic_0001>
module attributes {stable_mosaic.version = 11 : i64} {
  func.func @_contrastive_kernel(%arg0: i32, %arg1: i32, %arg2: memref<8x32xf32, #tpu.memory_space<vmem>>, %arg3: memref<8x32xf32, #tpu.memory_space<vmem>>, %arg4: memref<8x1xf32, #tpu.memory_space<vmem>>, %arg5: memref<1x8x128xf32, #tpu.memory_space<vmem>>, %arg6: memref<8x1xf32, #tpu.memory_space<vmem>>) attributes {dimension_semantics = [#tpu.dimension_semantics<parallel>, #tpu.dimension_semantics<arbitrary>], iteration_bounds = array<i64: 2, 2>, scalar_prefetch = 0 : i64, scratch_operands = 1 : i64, tpu.core_type = #tpu.core_type<tc>, window_params = [{transform_indices = @transform_0, window_bounds = array<i64: 8, 32>}, {transform_indices = @transform_1, window_bounds = array<i64: 8, 32>}, {transform_indices = @transform_2, window_bounds = array<i64: 8, 1>}, {transform_indices = @transform_3, window_bounds = array<i64: 1, 8, 128>}]} {
    %c0_i32 = arith.constant 0 : i32
    %0 = arith.cmpi eq, %arg1, %c0_i32 : i32
    %1 = arith.extui %0 : i1 to i32
    %c0_i32_0 = arith.constant 0 : i32
    %2 = arith.cmpi ne, %1, %c0_i32_0 : i32
    scf.if %2 {
      %cst_16 = arith.constant 0.000000e+00 : f32
      %37 = vector.broadcast %cst_16 : f32 to vector<8x1xf32>
      %c0_17 = arith.constant 0 : index
      %c0_18 = arith.constant 0 : index
      %38 = vector.load %arg6[%c0_17, %c0_18] : memref<8x1xf32, #tpu.memory_space<vmem>>, vector<8x1xf32>
      tpu.vector_store %arg6[%c0_17, %c0_18], %37 {strides = array<i32>} : memref<8x1xf32, #tpu.memory_space<vmem>>, vector<8x1xf32>,
    } else {
    }
    %c0 = arith.constant 0 : index
    %c0_1 = arith.constant 0 : index
    %3 = vector.load %arg2[%c0, %c0_1] : memref<8x32xf32, #tpu.memory_space<vmem>>, vector<8x32xf32>
    %c0_2 = arith.constant 0 : index
    %c0_3 = arith.constant 0 : index
    %4 = vector.load %arg3[%c0_2, %c0_3] : memref<8x32xf32, #tpu.memory_space<vmem>>, vector<8x32xf32>
    %c0_4 = arith.constant 0 : index
    %c0_5 = arith.constant 0 : index
    %5 = vector.load %arg4[%c0_4, %c0_5] : memref<8x1xf32, #tpu.memory_space<vmem>>, vector<8x1xf32>
    %6 = arith.subf %3, %4 : vector<8x32xf32>
    %cst = arith.constant 9.99999997E-7 : f32
    %7 = vector.broadcast %cst : f32 to vector<8x32xf32>
    %8 = arith.addf %6, %7 : vector<8x32xf32>
    %9 = arith.mulf %8, %8 : vector<8x32xf32>
    %cst_6 = arith.constant dense<0.000000e+00> : vector<8xf32>
    %10 = vector.multi_reduction <add>, %9, %cst_6 [1] : vector<8x32xf32> to vector<8xf32>
    %11 = vector.shape_cast %10 : vector<8xf32> to vector<8x1xf32>
    %12 = math.sqrt %11 : vector<8x1xf32>
    %13 = arith.mulf %5, %11 : vector<8x1xf32>
    %cst_7 = arith.constant 1.000000e+00 : f32
    %14 = vector.broadcast %cst_7 : f32 to vector<8x1xf32>
    %15 = arith.subf %14, %5 : vector<8x1xf32>
    %cst_8 = arith.constant 1.000000e+00 : f32
    %16 = vector.broadcast %cst_8 : f32 to vector<8x1xf32>
    %17 = arith.subf %16, %12 : vector<8x1xf32>
    %cst_9 = arith.constant 0.000000e+00 : f32
    %18 = vector.broadcast %cst_9 : f32 to vector<8x1xf32>
    %19 = arith.maximumf %17, %18 : vector<8x1xf32>
    %20 = arith.mulf %19, %19 : vector<8x1xf32>
    %21 = arith.mulf %15, %20 : vector<8x1xf32>
    %22 = arith.addf %13, %21 : vector<8x1xf32>
    %c2_i32 = arith.constant 2 : i32
    %23 = arith.muli %arg0, %c2_i32 : i32
    %24 = arith.addi %23, %arg1 : i32
    %c8_i32 = arith.constant 8 : i32
    %25 = arith.muli %24, %c8_i32 : i32
    %c8_i32_10 = arith.constant 8 : i32
    %26 = arith.addi %25, %c8_i32_10 : i32
    %c20_i32 = arith.constant 20 : i32
    %27 = arith.cmpi sle, %26, %c20_i32 : i32
    %28 = arith.extui %27 : i1 to i32
    %c0_i32_11 = arith.constant 0 : i32
    %29 = arith.cmpi ne, %28, %c0_i32_11 : i32
    scf.if %29 {
      %c0_16 = arith.constant 0 : index
      %c0_17 = arith.constant 0 : index
      %37 = vector.load %arg6[%c0_16, %c0_17] : memref<8x1xf32, #tpu.memory_space<vmem>>, vector<8x1xf32>
      %38 = arith.addf %37, %22 : vector<8x1xf32>
      %c0_18 = arith.constant 0 : index
      %c0_19 = arith.constant 0 : index
      %39 = vector.load %arg6[%c0_18, %c0_19] : memref<8x1xf32, #tpu.memory_space<vmem>>, vector<8x1xf32>
      tpu.vector_store %arg6[%c0_18, %c0_19], %38 {strides = array<i32>} : memref<8x1xf32, #tpu.memory_space<vmem>>, vector<8x1xf32>,
    } else {
    }
    %c8_i32_12 = arith.constant 8 : i32
    %30 = arith.addi %25, %c8_i32_12 : i32
    %c20_i32_13 = arith.constant 20 : i32
    %31 = arith.cmpi sgt, %30, %c20_i32_13 : i32
    %32 = arith.extui %31 : i1 to i32
    %c0_i32_14 = arith.constant 0 : i32
    %33 = arith.cmpi ne, %32, %c0_i32_14 : i32
    scf.if %33 {
      %37 = tpu.iota {dimensions = array<i32: 0>} : vector<8x1xi32>
      %38 = vector.broadcast %25 : i32 to vector<8x1xi32>
      %39 = arith.addi %37, %38 : vector<8x1xi32>
      %c0_16 = arith.constant 0 : index
      %c0_17 = arith.constant 0 : index
      %40 = vector.load %arg6[%c0_16, %c0_17] : memref<8x1xf32, #tpu.memory_space<vmem>>, vector<8x1xf32>
      %c20_i32_18 = arith.constant 20 : i32
      %41 = vector.broadcast %c20_i32_18 : i32 to vector<8x1xi32>
      %42 = arith.cmpi slt, %39, %41 : vector<8x1xi32>
      %cst_19 = arith.constant 0.000000e+00 : f32
      %43 = vector.broadcast %cst_19 : f32 to vector<8x1xf32>
      %44 = arith.select %42, %22, %43 : vector<8x1xi1>, vector<8x1xf32>
      %45 = arith.addf %40, %44 : vector<8x1xf32>
      %c0_20 = arith.constant 0 : index
      %c0_21 = arith.constant 0 : index
      %46 = vector.load %arg6[%c0_20, %c0_21] : memref<8x1xf32, #tpu.memory_space<vmem>>, vector<8x1xf32>
      tpu.vector_store %arg6[%c0_20, %c0_21], %45 {strides = array<i32>} : memref<8x1xf32, #tpu.memory_space<vmem>>, vector<8x1xf32>,
    } else {
    }
    %c1_i32 = arith.constant 1 : i32
    %34 = arith.cmpi eq, %arg1, %c1_i32 : i32
    %35 = arith.extui %34 : i1 to i32
    %c0_i32_15 = arith.constant 0 : i32
    %36 = arith.cmpi ne, %35, %c0_i32_15 : i32
    scf.if %36 {
      %c0_16 = arith.constant 0 : index
      %c0_17 = arith.constant 0 : index
      %37 = vector.load %arg6[%c0_16, %c0_17] : memref<8x1xf32, #tpu.memory_space<vmem>>, vector<8x1xf32>
      %38 = vector.shape_cast %37 : vector<8x1xf32> to vector<1x8x1xf32>
      %cst_18 = arith.constant dense<0.000000e+00> : vector<1xf32>
      %39 = vector.multi_reduction <add>, %38, %cst_18 [1, 2] : vector<1x8x1xf32> to vector<1xf32>
      %40 = vector.shape_cast %39 : vector<1xf32> to vector<1x1x1xf32>
      %41 = vector.extract %40[0, 0, 0] : f32 from vector<1x1x1xf32>
      %42 = vector.broadcast %41 : f32 to vector<1x8x128xf32>
      %c0_19 = arith.constant 0 : index
      %c0_20 = arith.constant 0 : index
      %c0_21 = arith.constant 0 : index
      %43 = vector.load %arg5[%c0_19, %c0_20, %c0_21] : memref<1x8x128xf32, #tpu.memory_space<vmem>>, vector<1x8x128xf32>
      tpu.vector_store %arg5[%c0_19, %c0_20, %c0_21], %42 {strides = array<i32>} : memref<1x8x128xf32, #tpu.memory_space<vmem>>, vector<1x8x128xf32>,
    } else {
    }
    return
  }
  func.func @transform_0(%arg0: i32, %arg1: i32) -> (i32, i32) {
    %c2_i32 = arith.constant 2 : i32
    %0 = arith.muli %arg0, %c2_i32 : i32
    %1 = arith.addi %0, %arg1 : i32
    %c2_i32_0 = arith.constant 2 : i32
    %2 = arith.minsi %1, %c2_i32_0 : i32
    %c0_i32 = arith.constant 0 : i32
    %c0_i32_1 = arith.constant 0 : i32
    return %2, %c0_i32 : i32, i32
  }
  func.func @transform_1(%arg0: i32, %arg1: i32) -> (i32, i32) {
    %c2_i32 = arith.constant 2 : i32
    %0 = arith.muli %arg0, %c2_i32 : i32
    %1 = arith.addi %0, %arg1 : i32
    %c2_i32_0 = arith.constant 2 : i32
    %2 = arith.minsi %1, %c2_i32_0 : i32
    %c0_i32 = arith.constant 0 : i32
    %c0_i32_1 = arith.constant 0 : i32
    return %2, %c0_i32 : i32, i32
  }
  func.func @transform_2(%arg0: i32, %arg1: i32) -> (i32, i32) {
    %c2_i32 = arith.constant 2 : i32
    %0 = arith.muli %arg0, %c2_i32 : i32
    %1 = arith.addi %0, %arg1 : i32
    %c2_i32_0 = arith.constant 2 : i32
    %2 = arith.minsi %1, %c2_i32_0 : i32
    %c0_i32 = arith.constant 0 : i32
    %c0_i32_1 = arith.constant 0 : i32
    return %2, %c0_i32 : i32, i32
  }
  func.func @transform_3(%arg0: i32, %arg1: i32) -> (i32, i32, i32) {
    %c0_i32 = arith.constant 0 : i32
    %c0_i32_0 = arith.constant 0 : i32
    %c0_i32_1 = arith.constant 0 : i32
    return %arg0, %c0_i32, %c0_i32_0 : i32, i32, i32
  }
}

</mosaic_0001>

<llo_original>
// kernel: tpu_custom_call.1
$region0: #{tpu_custom_call.1}
  #allocation0 [shape = 'u32[]', space=smem, size = 0x4, offset = 0x4, fixed_abs, tag = 'smem constant byte address 0x4 - core index']
  #allocation1 [shape = 'u32[144,128]{1,0:T(1,128)}', space=vmem, size = 0x12000, scoped, tag = 'internal scratch']
  #allocation2 [shape = 'f32[8,1]{1,0:T(8,128)}', space=vmem, size = 0x1000, scoped, tag = 'scratch operand']
  %s0 = inlined_call_operand.vmem [shape: f32[20,32], index: 0, kind: input, shape index: {}]
  %s1 = inlined_call_operand.hbm [shape: f32[20,32], index: 1, kind: input, shape index: {}]
  %s2 = inlined_call_operand.vmem [shape: f32[20,1], index: 2, kind: input, shape index: {}]
  %s3 = inlined_call_operand.hbm [shape: f32[2,8,128], index: 3, kind: output, shape index: {}]
  %s4 = sld [smem:[#allocation0]]
  $region65: #{tpu_custom_call.1} parent=0
    _
  %s6 = ssub.s32 1, %s4
  %s7 = scalar_select 0, %s6, %s4
  $region1: #{tpu_custom_call.1} parent=0
    #allocation3 [shape = 'u8[8192]{0}', space=vmem, size = 0x2000, scoped, tag = 'input window, operand 1']
    #allocation4 [shape = 's32[2]{0}', space=sflag, size = 0x8, scoped, tag = 'scoped memory for tpu_custom_call.1']
    #allocation5 [shape = 's32[2]{0}', space=sflag, size = 0x8, scoped, tag = 'scoped memory for tpu_custom_call.1']
    #allocation6 [shape = 'u8[8192]{0}', space=vmem, size = 0x2000, scoped, tag = 'output window, operand 0']
    %8 = vsyncpa [#allocation4], 0
    %s9 = scalar_lea.sflag [#allocation4], 1
    %10 = vsyncpa %s9, 0
    %11 = vsyncpa [#allocation5], 0
    %s12 = scalar_lea.sflag [#allocation5], 1
    %13 = vsyncpa %s12, 0
    loop: start=0, step=1, limit=6
    $region2: #{tpu_custom_call.1} parent=1 // loop_pre_header
      _
    $region3: #{tpu_custom_call.1} parent=1 // loop_header
      %s15 = sphi 0, %s19
      %p16 = scmp.ge.s32.totalorder %s15, 6
      %s22 = sphi 0, %s34
      %s23 = sphi 0, %s30
      %s24 = sphi 0, %s22
      %s25 = sphi 0, %s23
      %s26 = sphi 0, %s24
      %s27 = sphi 0, %s25
      %s45 = sphi 0, %s47
      %s48 = sphi 0, %s45
      %s49 = sphi 0, %s48
      %s65 = sphi 0, %s49
      %s79 = sphi 0, %s81
      %s82 = sphi 0, %s79
      %s83 = sphi 0, %s82
      %s99 = sphi 0, %s83
      %s113 = sphi 0, %s115
      %s116 = sphi 0, %s113
      %s117 = sphi 0, %s116
      %s133 = sphi 0, %s117
      %s139 = sphi 0, %s141
      %s142 = sphi 0, %s139
      %s143 = sphi 0, %s142
      %s159 = sphi 0, %s143
    $region4: #{tpu_custom_call.1} parent=1 // loop_header_branch
      %18 = sbr.rel (%p16) target = $region8
    $region5: #{tpu_custom_call.1} parent=1 // loop_body
      %s20 = ssub.s32 %s15, 1
      %s21 = ssub.s32 %s15, 2
      %s28 = sadd.s32 1, %s23
      %p29 = scmp.ge.s32.totalorder %s28, 2
      %s30 = scalar_select %p29, 0, %s28
      %s31 = sadd.s32 1, %s22
      %s32 = scalar_select %p29, %s31, %s22
      %p33 = scmp.ge.s32.totalorder %s32, 2
      %s34 = scalar_select %p33, 0, %s32
      %s35 = smul.u32 %s22, 2
      %s36 = sadd.s32 %s35, %s23
      %p37 = scmp.lt.s32.totalorder %s36, 2
      %s38 = scalar_select %p37, %s36, 2
      %s39 = smul.u32 %s34, 2
      %s40 = sadd.s32 %s39, %s30
      %p41 = scmp.lt.s32.totalorder %s40, 2
      %s42 = scalar_select %p41, %s40, 2
      %s43 = ssub.s32 %s38, %s42
      %p44 = scmp.eq.s32.totalorder %s43, 0
      %s46 = sadd.s32 %s45, 1
      %s47 = scalar_select %p44, %s45, %s46
      %p50 = pneg %p44
      %p51 = scmp.eq.s32.totalorder %s15, 3
      %p52 = por %p50, %p51
      %p53 = scmp.ne.s32.totalorder %s45, %s48
      %p54 = scmp.eq.s32.totalorder %s15, 0
      %p55 = por %p53, %p54
      %p56 = scmp.ne.s32.totalorder %s45, %s48
      %p57 = scmp.eq.s32.totalorder %s20, 3
      %p58 = por %p56, %p57
      %p59 = scmp.ne.s32.totalorder %s48, %s49
      %p60 = scmp.eq.s32.totalorder %s20, 0
      %p61 = por %p59, %p60
      %p62 = scmp.ne.s32.totalorder %s48, %s49
      %p63 = scmp.eq.s32.totalorder %s21, 3
      %p64 = por %p62, %p63
      %p66 = scmp.ne.s32.totalorder %s49, %s65
      %p67 = scmp.eq.s32.totalorder %s21, 0
      %p68 = por %p66, %p67
      %s69 = smul.u32 %s22, 2
      %s70 = sadd.s32 %s69, %s23
      %p71 = scmp.lt.s32.totalorder %s70, 2
      %s72 = scalar_select %p71, %s70, 2
      %s73 = smul.u32 %s34, 2
      %s74 = sadd.s32 %s73, %s30
      %p75 = scmp.lt.s32.totalorder %s74, 2
      %s76 = scalar_select %p75, %s74, 2
      %s77 = ssub.s32 %s72, %s76
      %p78 = scmp.eq.s32.totalorder %s77, 0
      %s80 = sadd.s32 %s79, 1
      %s81 = scalar_select %p78, %s79, %s80
      %p84 = pneg %p78
      %p85 = scmp.eq.s32.totalorder %s15, 3
      %p86 = por %p84, %p85
      %p87 = scmp.ne.s32.totalorder %s79, %s82
      %p88 = scmp.eq.s32.totalorder %s15, 0
      %p89 = por %p87, %p88
      %p90 = scmp.ne.s32.totalorder %s79, %s82
      %p91 = scmp.eq.s32.totalorder %s20, 3
      %p92 = por %p90, %p91
      %p93 = scmp.ne.s32.totalorder %s82, %s83
      %p94 = scmp.eq.s32.totalorder %s20, 0
      %p95 = por %p93, %p94
      %p96 = scmp.ne.s32.totalorder %s82, %s83
      %p97 = scmp.eq.s32.totalorder %s21, 3
      %p98 = por %p96, %p97
      %p100 = scmp.ne.s32.totalorder %s83, %s99
      %p101 = scmp.eq.s32.totalorder %s21, 0
      %p102 = por %p100, %p101
      %s103 = smul.u32 %s22, 2
      %s104 = sadd.s32 %s103, %s23
      %p105 = scmp.lt.s32.totalorder %s104, 2
      %s106 = scalar_select %p105, %s104, 2
      %s107 = smul.u32 %s34, 2
      %s108 = sadd.s32 %s107, %s30
      %p109 = scmp.lt.s32.totalorder %s108, 2
      %s110 = scalar_select %p109, %s108, 2
      %s111 = ssub.s32 %s106, %s110
      %p112 = scmp.eq.s32.totalorder %s111, 0
      %s114 = sadd.s32 %s113, 1
      %s115 = scalar_select %p112, %s113, %s114
      %p118 = pneg %p112
      %p119 = scmp.eq.s32.totalorder %s15, 3
      %p120 = por %p118, %p119
      %p121 = scmp.ne.s32.totalorder %s113, %s116
      %p122 = scmp.eq.s32.totalorder %s15, 0
      %p123 = por %p121, %p122
      %p124 = scmp.ne.s32.totalorder %s113, %s116
      %p125 = scmp.eq.s32.totalorder %s20, 3
      %p126 = por %p124, %p125
      %p127 = scmp.ne.s32.totalorder %s116, %s117
      %p128 = scmp.eq.s32.totalorder %s20, 0
      %p129 = por %p127, %p128
      %p130 = scmp.ne.s32.totalorder %s116, %s117
      %p131 = scmp.eq.s32.totalorder %s21, 3
      %p132 = por %p130, %p131
      %p134 = scmp.ne.s32.totalorder %s117, %s133
      %p135 = scmp.eq.s32.totalorder %s21, 0
      %p136 = por %p134, %p135
      %s137 = ssub.s32 %s22, %s34
      %p138 = scmp.eq.s32.totalorder %s137, 0
      %s140 = sadd.s32 %s139, 1
      %s141 = scalar_select %p138, %s139, %s140
      %p144 = pneg %p138
      %p145 = scmp.eq.s32.totalorder %s15, 3
      %p146 = por %p144, %p145
      %p147 = scmp.ne.s32.totalorder %s139, %s142
      %p148 = scmp.eq.s32.totalorder %s15, 0
      %p149 = por %p147, %p148
      %p150 = scmp.ne.s32.totalorder %s139, %s142
      %p151 = scmp.eq.s32.totalorder %s20, 3
      %p152 = por %p150, %p151
      %p153 = scmp.ne.s32.totalorder %s142, %s143
      %p154 = scmp.eq.s32.totalorder %s20, 0
      %p155 = por %p153, %p154
      %p156 = scmp.ne.s32.totalorder %s142, %s143
      %p157 = scmp.eq.s32.totalorder %s21, 3
      %p158 = por %p156, %p157
      %p160 = scmp.ne.s32.totalorder %s143, %s159
      %p161 = scmp.eq.s32.totalorder %s21, 0
      %p162 = por %p160, %p161
      %p163 = scmp.le.s32.totalorder 1, %s15
      %p164 = scmp.lt.s32.totalorder %s15, 5
      %p165 = pnand %p163, %p164
      %p166 = pneg %p165
      // Predicated region
      $region9: #{tpu_custom_call.1} parent=5 // pred_check
        _
      $region10: #{tpu_custom_call.1} parent=5 // pred_check_branch
        %168 = sbr.rel (%p165) target = $region12
      $region11: #{tpu_custom_call.1} parent=5 // pred_region
        %s169 = ssub.s32 %s15, 1
      $region12: #{tpu_custom_call.1} parent=5 // pred_fallthru
        _
      %p170 = scmp.lt.s32.totalorder %s15, 4
      // Predicated region
      $region13: #{tpu_custom_call.1} parent=5 // pred_check
        %p171 = pneg %p170
      $region14: #{tpu_custom_call.1} parent=5 // pred_check_branch
        %173 = sbr.rel (%p171) target = $region16
      $region15: #{tpu_custom_call.1} parent=5 // pred_region
        // Predicated region
        $region17: #{tpu_custom_call.1} parent=15 // pred_check
          %p174 = pneg %p55
        $region18: #{tpu_custom_call.1} parent=15 // pred_check_branch
          %176 = sbr.rel (%p174) target = $region20
        $region19: #{tpu_custom_call.1} parent=15 // pred_region
          %s177 = smul.u32 %s22, 2
          %s178 = sadd.s32 %s177, %s23
          %p179 = scmp.lt.s32.totalorder %s178, 2
          %s180 = scalar_select %p179, %s178, 2
          %p181 = scmp.lt.s32.totalorder %s180, 2
          %s182 = scalar_select %p181, %s180, 2
          %s183 = smul.addr %s182, 8
          %s184 = scalar_lea.vmem %s0, %s183
          %s185 = smul.u32 %s22, 2
          %s186 = sadd.s32 %s185, %s23
          %p187 = scmp.lt.s32.totalorder %s186, 2
          %s188 = scalar_select %p187, %s186, 2
        $region20: #{tpu_custom_call.1} parent=15 // pred_fallthru
          _
        // Predicated region
        $region21: #{tpu_custom_call.1} parent=15 // pred_check
          %p189 = pneg %p89
        $region22: #{tpu_custom_call.1} parent=15 // pred_check_branch
          %191 = sbr.rel (%p189) target = $region24
        $region23: #{tpu_custom_call.1} parent=15 // pred_region
          %s192 = sand.u32 %s79, 1
          %s193 = scalar_lea.sflag [#allocation4], %s192
          %s194 = sand.u32 %s79, 1
          %s195 = smul.addr %s194, 8
          %s196 = scalar_lea.vmem [#allocation3], %s195
          %s197 = smul.u32 %s22, 2
          %s198 = sadd.s32 %s197, %s23
          %p199 = scmp.lt.s32.totalorder %s198, 2
          %s200 = scalar_select %p199, %s198, 2
          %s202 = ssub.s32 128, 128
          %203 = vsyncadd %s193, %s202
          %s204 = smul.addr %s200, 128
          %s205 = scalar_lea.hbm %s1, %s204
          %s207 = sshll.u32 %s196, 4
          %s208 = int_to_ptr.vmem [resolvable:$true] %s207
          %210 = dma.hbm_to_vmem [thread:$0]  %s205, 128, %s208, %s193
        $region24: #{tpu_custom_call.1} parent=15 // pred_fallthru
          _
        // Predicated region
        $region25: #{tpu_custom_call.1} parent=15 // pred_check
          %p211 = pneg %p123
        $region26: #{tpu_custom_call.1} parent=15 // pred_check_branch
          %213 = sbr.rel (%p211) target = $region28
        $region27: #{tpu_custom_call.1} parent=15 // pred_region
          %s214 = smul.u32 %s22, 2
          %s215 = sadd.s32 %s214, %s23
          %p216 = scmp.lt.s32.totalorder %s215, 2
          %s217 = scalar_select %p216, %s215, 2
          %p218 = scmp.lt.s32.totalorder %s217, 2
          %s219 = scalar_select %p218, %s217, 2
          %s220 = smul.addr %s219, 8
          %s221 = scalar_lea.vmem %s2, %s220
          %s222 = smul.u32 %s22, 2
          %s223 = sadd.s32 %s222, %s23
          %p224 = scmp.lt.s32.totalorder %s223, 2
          %s225 = scalar_select %p224, %s223, 2
        $region28: #{tpu_custom_call.1} parent=15 // pred_fallthru
          _
      $region16: #{tpu_custom_call.1} parent=5 // pred_fallthru
        _
      %p226 = scmp.le.s32.totalorder 1, %s15
      %p227 = scmp.lt.s32.totalorder %s15, 5
      %p228 = pnand %p226, %p227
      %p229 = pneg %p228
      // Predicated region
      $region29: #{tpu_custom_call.1} parent=5 // pred_check
        _
      $region30: #{tpu_custom_call.1} parent=5 // pred_check_branch
        %231 = sbr.rel (%p228) target = $region32
      $region31: #{tpu_custom_call.1} parent=5 // pred_region
        %s232 = ssub.s32 %s15, 1
        %s233 = sand.u32 %s82, 1
        %s234 = scalar_lea.sflag [#allocation4], %s233
        %s235 = sand.u32 %s82, 1
        %s236 = smul.addr %s235, 8
        %s237 = scalar_lea.vmem [#allocation3], %s236
        // Predicated region
        $region33: #{tpu_custom_call.1} parent=31 // pred_check
          %p238 = pneg %p95
        $region34: #{tpu_custom_call.1} parent=31 // pred_check_branch
          %240 = sbr.rel (%p238) target = $region36
        $region35: #{tpu_custom_call.1} parent=31 // pred_region
          %241 = dma.done %s234, 128
        $region36: #{tpu_custom_call.1} parent=31 // pred_fallthru
          _
        %s242 = smul.u32 %s24, 2
        %s243 = sadd.s32 %s242, %s25
        %p244 = scmp.lt.s32.totalorder %s243, 2
        %s245 = scalar_select %p244, %s243, 2
        %p246 = scmp.lt.s32.totalorder %s245, 2
        %s247 = scalar_select %p246, %s245, 2
        %s248 = smul.addr %s247, 8
        %s249 = scalar_lea.vmem %s0, %s248
        %p250 = pneg %p61
        %p251 = pneg %p58
        %s252 = sand.u32 %s82, 1
        %s253 = scalar_lea.sflag [#allocation4], %s252
        %s254 = sand.u32 %s82, 1
        %s255 = smul.addr %s254, 8
        %s256 = scalar_lea.vmem [#allocation3], %s255
        %p257 = pneg %p95
        %p258 = pneg %p92
        %s259 = smul.u32 %s24, 2
        %s260 = sadd.s32 %s259, %s25
        %p261 = scmp.lt.s32.totalorder %s260, 2
        %s262 = scalar_select %p261, %s260, 2
        %p263 = scmp.lt.s32.totalorder %s262, 2
        %s264 = scalar_select %p263, %s262, 2
        %s265 = smul.addr %s264, 8
        %s266 = scalar_lea.vmem %s2, %s265
        %p267 = pneg %p129
        %p268 = pneg %p126
        %p269 = pneg %p155
        %p270 = pneg %p152
        %s271 = sand.u32 %s142, 1
        %s272 = scalar_lea.sflag [#allocation5], %s271
        %s273 = sand.u32 %s142, 1
        %s274 = smul.addr %s273, 8
        %s275 = scalar_lea.vmem [#allocation6], %s274
        %s276 = smul.u32 %s24, 2
        %s277 = sadd.s32 %s276, %s25
        %p278 = scmp.lt.s32.totalorder %s277, 2
        %s279 = scalar_select %p278, %s277, 2
        %p280 = scmp.lt.s32.totalorder %s279, 2
        %s281 = scalar_select %p280, %s279, 2
        %s282 = smul.addr %s281, 8
        %s283 = scalar_lea.vmem %s0, %s282
        %s284 = smul.u32 %s24, 2
        %s285 = sadd.s32 %s284, %s25
        %p286 = scmp.lt.s32.totalorder %s285, 2
        %s287 = scalar_select %p286, %s285, 2
        %s288 = smul.u32 %s24, 2
        %s289 = sadd.s32 %s288, %s25
        %p290 = scmp.lt.s32.totalorder %s289, 2
        %s291 = scalar_select %p290, %s289, 2
        %s292 = smul.u32 %s24, 2
        %s293 = sadd.s32 %s292, %s25
        %p294 = scmp.lt.s32.totalorder %s293, 2
        %s295 = scalar_select %p294, %s293, 2
        %p296 = scmp.lt.s32.totalorder %s295, 2
        %s297 = scalar_select %p296, %s295, 2
        %s298 = smul.addr %s297, 8
        %s299 = scalar_lea.vmem %s2, %s298
        %s300 = smul.u32 %s24, 2
        %s301 = sadd.s32 %s300, %s25
        %p302 = scmp.lt.s32.totalorder %s301, 2
        %s303 = scalar_select %p302, %s301, 2
        %p304 = scmp.eq.s32.totalorder %s25, 0
        // Predicated region
        $region37: #{tpu_custom_call.1} parent=31 // pred_check
          %p305 = pneg %p304
        $region38: #{tpu_custom_call.1} parent=31 // pred_check_branch
          %307 = sbr.rel (%p305) target = $region40
        $region39: #{tpu_custom_call.1} parent=31 // pred_region
          %vm308 = vcmask 7168
          %309 = vst.msk [vmem:[#allocation2] sm:$0xff] %vm308, 0.0
        $region40: #{tpu_custom_call.1} parent=31 // pred_fallthru
          _
        %v310 = vld [vmem:[%s283] sm:$0xff]
        %v311 = vld [vmem:[%s237] sm:$0xff]
        %v312 = vld [vmem:[%s299] sm:$0xff]
        %v313 = vsub.f32 %v310, %v311
        %v314 = vadd.f32 %v313, 1e-06
        %v315 = vmul.f32 %v314, %v314
        %vm316 = vcmask 261120
        %v317 = vsel %vm316, %v315, 0.0
        %318 = vadd.xlane.f32.xlu0 %v317
        %v319 = vpop.xlane.xlu0 %318
        %v320 = vrsqrt.pop %v319
        %v321 = vmul.f32 %v319, %v320
        %vm322 = vcmp.eq.f32.partialorder %v319, inf
        %v323 = vsel %vm322, %v319, %v321
        %vm324 = vcmp.eq.f32.partialorder %v319, 0.0
        %v325 = vand.u32 %v319, 2147483648
        %v326 = vsel %vm324, %v325, %v323
        %v327 = vmul.f32 %v312, %v319
        %v328 = vsub.f32 1.0, %v312
        %v329 = vsub.f32 1.0, %v326
        %v330 = vmax.f32 %v329, 0.0
        %v331 = vmul.f32 %v330, %v330
        %v332 = vmul.f32 %v328, %v331
        %v333 = vadd.f32 %v327, %v332
        %s334 = smul.u32 %s24, 2
        %s335 = sadd.s32 %s334, %s25
        %s336 = smul.u32 %s335, 8
        %s337 = sadd.s32 %s336, 8
        %p338 = scmp.le.s32.totalorder %s337, 20
        // Predicated region
        $region41: #{tpu_custom_call.1} parent=31 // pred_check
          %p339 = pneg %p338
        $region42: #{tpu_custom_call.1} parent=31 // pred_check_branch
          %341 = sbr.rel (%p339) target = $region44
        $region43: #{tpu_custom_call.1} parent=31 // pred_region
          %v342 = vld [vmem:[#allocation2] sm:$0xff]
          %v343 = vadd.f32 %v342, %v333
          %vm344 = vcmask 7168
          %345 = vst.msk [vmem:[#allocation2] sm:$0xff] %vm344, %v343
        $region44: #{tpu_custom_call.1} parent=31 // pred_fallthru
          _
        %p346 = scmp.gt.s32.totalorder %s337, 20
        // Predicated region
        $region45: #{tpu_custom_call.1} parent=31 // pred_check
          %p347 = pneg %p346
        $region46: #{tpu_custom_call.1} parent=31 // pred_check_branch
          %349 = sbr.rel (%p347) target = $region48
        $region47: #{tpu_custom_call.1} parent=31 // pred_region
          %v350 = vlaneseq
          %v351 = vshrl.u32 %v350, 7
          %v352 = vstv %s336
          %v353 = vadd.s32 %v351, %v352
          %v354 = vld [vmem:[#allocation2] sm:$0xff]
          %vm355 = vcmp.lt.s32.totalorder %v353, 20
          %v356 = vsel %vm355, %v333, 0.0
          %v357 = vadd.f32 %v354, %v356
          %vm358 = vcmask 7168
          %359 = vst.msk [vmem:[#allocation2] sm:$0xff] %vm358, %v357
        $region48: #{tpu_custom_call.1} parent=31 // pred_fallthru
          _
        %p360 = scmp.eq.s32.totalorder %s25, 1
        // Predicated region
        $region49: #{tpu_custom_call.1} parent=31 // pred_check
          %p361 = pneg %p360
        $region50: #{tpu_custom_call.1} parent=31 // pred_check_branch
          %363 = sbr.rel (%p361) target = $region52
        $region51: #{tpu_custom_call.1} parent=31 // pred_region
          %v364 = vld [vmem:[#allocation2] sm:$0xff]
          %vm365 = vcmask 7168
          %v366 = vsel %vm365, %v364, 0.0
          %367 = vadd.xlane.f32.xlu0 %v366
          %v368 = vpop.xlane.xlu0 %367
          %v369 = vrot.slane %v368, 4
          %v370 = vadd.f32 %v368, %v369
          %v371 = vrot.slane %v370, 2
          %v372 = vadd.f32 %v370, %v371
          %v373 = vrot.slane %v372, 1
          %v374 = vadd.f32 %v372, %v373
          %s375 = vtos %v374
          %v376 = vstv %s375
          %377 = vst [vmem:[%s275] sm:$0xff] %v376
        $region52: #{tpu_custom_call.1} parent=31 // pred_fallthru
          _
        %s378 = sand.u32 %s142, 1
        %s379 = scalar_lea.sflag [#allocation5], %s378
        %s380 = sand.u32 %s142, 1
        %s381 = smul.addr %s380, 8
        %s382 = scalar_lea.vmem [#allocation6], %s381
        // Predicated region
        $region53: #{tpu_custom_call.1} parent=31 // pred_check
          %p383 = pneg %p152
        $region54: #{tpu_custom_call.1} parent=31 // pred_check_branch
          %385 = sbr.rel (%p383) target = $region56
        $region55: #{tpu_custom_call.1} parent=31 // pred_region
          %s387 = ssub.s32 128, 128
          %388 = vsyncadd %s379, %s387
          %s389 = smul.addr %s24, 128
          %s390 = scalar_lea.hbm %s3, %s389
          %s392 = sshll.u32 %s382, 4
          %s393 = int_to_ptr.vmem [resolvable:$true] %s392
          %395 = dma.vmem_to_hbm [thread:$0]  %s393, 128, %s390, %s379
        $region56: #{tpu_custom_call.1} parent=31 // pred_fallthru
          _
      $region32: #{tpu_custom_call.1} parent=5 // pred_fallthru
        _
      %p396 = scmp.le.s32.totalorder 2, %s15
      // Predicated region
      $region57: #{tpu_custom_call.1} parent=5 // pred_check
        %p397 = pneg %p396
      $region58: #{tpu_custom_call.1} parent=5 // pred_check_branch
        %399 = sbr.rel (%p397) target = $region60
      $region59: #{tpu_custom_call.1} parent=5 // pred_region
        %s400 = ssub.s32 %s15, 2
        // Predicated region
        $region61: #{tpu_custom_call.1} parent=59 // pred_check
          %p401 = pneg %p158
        $region62: #{tpu_custom_call.1} parent=59 // pred_check_branch
          %403 = sbr.rel (%p401) target = $region64
        $region63: #{tpu_custom_call.1} parent=59 // pred_region
          %s404 = sand.u32 %s143, 1
          %s405 = scalar_lea.sflag [#allocation5], %s404
          %s406 = sand.u32 %s143, 1
          %s407 = smul.addr %s406, 8
          %s408 = scalar_lea.vmem [#allocation6], %s407
          %409 = dma.done %s405, 128
        $region64: #{tpu_custom_call.1} parent=59 // pred_fallthru
          _
      $region60: #{tpu_custom_call.1} parent=5 // pred_fallthru
        _
    $region6: #{tpu_custom_call.1} parent=1 // loop_footer
      %s19 = sadd.s32 1, %s15
    $region7: #{tpu_custom_call.1} parent=1 // loop_footer_branch
      %14 = sbr.rel target = $region3
    $region8: #{tpu_custom_call.1} parent=1 // loop_exit
      _
    %410 = vsyncpa [#allocation4], 1
    %s411 = scalar_lea.sflag [#allocation4], 1
    %412 = vsyncpa %s411, 1
    %413 = vsyncpa [#allocation5], 1
    %s414 = scalar_lea.sflag [#allocation5], 1
    %415 = vsyncpa %s414, 1

</llo_original>
